<compile_context>
chip_gen: v6e
topology: v6e:2x2x1
jax: 0.10.0
libtpu: 0.0.40
codegen_flags: <defaults>
</compile_context>

<pallas_src>
import jax
import jax.numpy as jnp
from jax import lax
from jax.experimental import pallas as pl
from jax.experimental.pallas import tpu as pltpu


def _bigru_fc_kernel(maxlen_ref, gi_f_ref, gi_b_ref, mask_ref,
                     whh_f_ref, whh_b_ref, bhn_f_ref, bhn_b_ref,
                     wfc_b_ref, wfc_f_ref, bfc_ref, out_ref):
    _, B, H = mask_ref.shape

    # Loop-invariant loads / broadcasts hoisted out of the recurrence
    # (JAX does not CSE broadcast_in_dim inside loops).
    whh_f = whh_f_ref[...]                                   # (H, 3H) bf16
    whh_b = whh_b_ref[...]                                   # (H, 3H) bf16
    bhn_f = jnp.broadcast_to(bhn_f_ref[...], (B, H))         # (B, H) f32
    bhn_b = jnp.broadcast_to(bhn_b_ref[...], (B, H))         # (B, H) f32

    L = maxlen_ref[0]                                        # max(seq_lengths)

    def gru_step(gi_t, h, whh, bhn):
        # gi_t already holds  W_ih x + (b_ir+b_hr | b_iz+b_hz | b_in).
        # PyTorch GRU cell:
        #   r = sig(gi_r + gh_r); z = sig(gi_z + gh_z)
        #   n = tanh(gi_n + r * (gh_n + b_hn)); h' = (1-z)*n + z*h
        gh = jnp.dot(h.astype(whh.dtype), whh,
                     preferred_element_type=jnp.float32)      # (B, 3H)
        r = jax.nn.sigmoid(gi_t[:, 0:H] + gh[:, 0:H])
        z = jax.nn.sigmoid(gi_t[:, H:2 * H] + gh[:, H:2 * H])
        n = jnp.tanh(gi_t[:, 2 * H:3 * H] + r * (gh[:, 2 * H:3 * H] + bhn))
        return (1.0 - z) * n + z * h

    # Fused forward/backward recurrence over the valid prefix [0, L).
    def body(i, carry):
        h_f, h_b = carry
        tf = i
        tb = L - 1 - i
        h_f_new = gru_step(gi_f_ref[tf], h_f, whh_f, bhn_f)
        h_b_new = gru_step(gi_b_ref[tb], h_b, whh_b, bhn_b)
        h_f = jnp.where(mask_ref[tf] > 0.5, h_f_new, h_f)     # freeze once t >= len[b]
        h_b = jnp.where(mask_ref[tb] > 0.5, h_b_new, h_b)     # inactive until t < len[b]
        return (h_f, h_b)

    h0 = jnp.zeros((B, H), jnp.float32)
    h_fwd, h_bwd = lax.fori_loop(0, L, body, (h0, h0))

    # fc(cat([h_bwd, h_fwd], axis=1)) as two partial matmuls (no in-kernel concat).
    out = (jnp.dot(h_bwd.astype(wfc_b_ref.dtype), wfc_b_ref[...],
                   preferred_element_type=jnp.float32)
           + jnp.dot(h_fwd.astype(wfc_f_ref.dtype), wfc_f_ref[...],
                     preferred_element_type=jnp.float32)
           + bfc_ref[...])
    out_ref[...] = out


def rnn_classifier_forward(tokens, seq_lengths, params):
    """tokens: (batch, seq_len) int32; seq_lengths: (batch,) int32 (sorted desc)."""
    emb_tbl = params["embedding"]
    H = emb_tbl.shape[1]
    O = params["fc_b"].shape[-1]
    B, T = tokens.shape

    # input.t() -> (T, B); embedding lookup (plain XLA gather glue).
    emb = jnp.take(emb_tbl, tokens.T, axis=0)                          # (T, B, H) f32

    # ---- Hoisted input projection: one big matmul for both directions ----
    # Fold r/z biases (b_ih + b_hh) and the n-gate input bias into gi;
    # only b_hn stays inside the recurrence (multiplied by r).
    def fold_bias(bih, bhh):
        return jnp.concatenate([bih[:, :2 * H] + bhh[:, :2 * H],
                                bih[:, 2 * H:]], axis=1)               # (1, 3H)

    wih_cat = jnp.concatenate([params["wih_f"], params["wih_b"]], axis=1)   # (H, 6H)
    b_cat = jnp.concatenate([fold_bias(params["bih_f"], params["bhh_f"]),
                             fold_bias(params["bih_b"], params["bhh_b"])],
                            axis=1)                                          # (1, 6H)
    gi_all = (jnp.dot(emb.reshape(T * B, H).astype(jnp.bfloat16),
                      wih_cat.astype(jnp.bfloat16),
                      preferred_element_type=jnp.float32)
              + b_cat).reshape(T, B, 6 * H)
    gi_f = gi_all[:, :, :3 * H]                                        # (T, B, 3H) f32
    gi_b = gi_all[:, :, 3 * H:]                                        # (T, B, 3H) f32

    # pack_padded_sequence validity mask, pre-broadcast to (T, B, H) in the wrapper
    # so no per-step lane broadcast is needed inside the serial loop.
    mask = (jnp.arange(T, dtype=jnp.int32)[:, None]
            < seq_lengths[None, :]).astype(jnp.float32)                # (T, B)
    mask = jnp.broadcast_to(mask[:, :, None], (T, B, H))

    max_len = jnp.max(seq_lengths).astype(jnp.int32).reshape(1)        # SMEM scalar

    bhn_f = params["bhh_f"][:, 2 * H:]                                 # (1, H)
    bhn_b = params["bhh_b"][:, 2 * H:]

    smem = pl.BlockSpec(memory_space=pltpu.MemorySpace.SMEM)
    vmem = pl.BlockSpec(memory_space=pltpu.MemorySpace.VMEM)
    return pl.pallas_call(
        _bigru_fc_kernel,
        out_shape=jax.ShapeDtypeStruct((B, O), jnp.float32),
        in_specs=[smem] + [vmem] * 10,
        out_specs=vmem,
    )(max_len, gi_f, gi_b, mask,
      params["whh_f"].astype(jnp.bfloat16), params["whh_b"].astype(jnp.bfloat16),
      bhn_f, bhn_b,
      params["fc_w"][:H, :].astype(jnp.bfloat16),   # backward-hidden half of fc
      params["fc_w"][H:, :].astype(jnp.bfloat16),   # forward-hidden half of fc
      params["fc_b"])


def init_params(key, vocab_size, hidden_size, output_size):
    """Deterministic, PyTorch-default-style initialization."""
    ks = jax.random.split(key, 12)
    H = hidden_size
    k_gru = 1.0 / jnp.sqrt(H)
    k_fc = 1.0 / jnp.sqrt(2 * H)

    def u(k, shape, bound):
        return jax.random.uniform(k, shape, jnp.float32, -bound, bound)

    return {
        # nn.Embedding default: N(0, 1)
        "embedding": jax.random.normal(ks[0], (vocab_size, H), jnp.float32),
        # GRU weights stored transposed: (H, 3H), gate order [r, z, n]
        "wih_f": u(ks[1], (H, 3 * H), k_gru),
        "whh_f": u(ks[2], (H, 3 * H), k_gru),
        "bih_f": u(ks[3], (1, 3 * H), k_gru),
        "bhh_f": u(ks[4], (1, 3 * H), k_gru),
        "wih_b": u(ks[5], (H, 3 * H), k_gru),
        "whh_b": u(ks[6], (H, 3 * H), k_gru),
        "bih_b": u(ks[7], (1, 3 * H), k_gru),
        "bhh_b": u(ks[8], (1, 3 * H), k_gru),
        # Linear(2H -> O), stored transposed: (2H, O); rows [0:H]=backward, [H:2H]=forward
        "fc_w": u(ks[9], (2 * H, output_size), k_fc),
        "fc_b": u(ks[10], (1, output_size), k_fc),
    }


if __name__ == "__main__":
    VOCAB = 32          # input_size (char vocabulary)
    HIDDEN = 32         # hidden_size
    OUTPUT = 8          # output_size (number of classes)
    BATCH = 4
    SEQ = 8

    key = jax.random.PRNGKey(0)
    k_par, k_tok = jax.random.split(key)

    params = init_params(k_par, VOCAB, HIDDEN, OUTPUT)

    tokens = jax.random.randint(k_tok, (BATCH, SEQ), 0, VOCAB, dtype=jnp.int32)
    # pack_padded_sequence expects lengths sorted in decreasing order
    seq_lengths = jnp.array([8, 6, 5, 3], dtype=jnp.int32)

    fwd = jax.jit(rnn_classifier_forward)
    out = fwd(tokens, seq_lengths, params)
    jax.block_until_ready(out)
    assert out.shape == (BATCH, OUTPUT)
    print("KERNEL_OK")
</pallas_src>

<mosaic_0001>
module attributes {stable_mosaic.version = 11 : i64} {
  func.func @_bigru_fc_kernel(%arg0: memref<1xi32, #tpu.memory_space<smem>>, %arg1: memref<8x4x96xf32, #tpu.memory_space<vmem>>, %arg2: memref<8x4x96xf32, #tpu.memory_space<vmem>>, %arg3: memref<8x4x32xf32, #tpu.memory_space<vmem>>, %arg4: memref<32x96xbf16, #tpu.memory_space<vmem>>, %arg5: memref<32x96xbf16, #tpu.memory_space<vmem>>, %arg6: memref<1x32xf32, #tpu.memory_space<vmem>>, %arg7: memref<1x32xf32, #tpu.memory_space<vmem>>, %arg8: memref<32x8xbf16, #tpu.memory_space<vmem>>, %arg9: memref<32x8xbf16, #tpu.memory_space<vmem>>, %arg10: memref<1x8xf32, #tpu.memory_space<vmem>>, %arg11: memref<4x8xf32, #tpu.memory_space<vmem>>) attributes {dimension_semantics = [], scalar_prefetch = 0 : i64, scratch_operands = 0 : i64, tpu.core_type = #tpu.core_type<tc>} {
    %c0 = arith.constant 0 : index
    %c0_0 = arith.constant 0 : index
    %0 = vector.load %arg4[%c0, %c0_0] : memref<32x96xbf16, #tpu.memory_space<vmem>>, vector<32x96xbf16>
    %c0_1 = arith.constant 0 : index
    %c0_2 = arith.constant 0 : index
    %1 = vector.load %arg5[%c0_1, %c0_2] : memref<32x96xbf16, #tpu.memory_space<vmem>>, vector<32x96xbf16>
    %c0_3 = arith.constant 0 : index
    %c0_4 = arith.constant 0 : index
    %2 = vector.load %arg6[%c0_3, %c0_4] : memref<1x32xf32, #tpu.memory_space<vmem>>, vector<1x32xf32>
    %3 = vector.shape_cast %2 : vector<1x32xf32> to vector<1x32xf32>
    %4 = vector.broadcast %3 : vector<1x32xf32> to vector<4x32xf32>
    %c0_5 = arith.constant 0 : index
    %c0_6 = arith.constant 0 : index
    %5 = vector.load %arg7[%c0_5, %c0_6] : memref<1x32xf32, #tpu.memory_space<vmem>>, vector<1x32xf32>
    %6 = vector.shape_cast %5 : vector<1x32xf32> to vector<1x32xf32>
    %7 = vector.broadcast %6 : vector<1x32xf32> to vector<4x32xf32>
    %c0_7 = arith.constant 0 : index
    %8 = memref.load %arg0[%c0_7] : memref<1xi32, #tpu.memory_space<smem>>
    %cst = arith.constant 0.000000e+00 : f32
    %9 = vector.broadcast %cst : f32 to vector<4x32xf32>
    %c0_i32 = arith.constant 0 : i32
    %10 = arith.subi %8, %c0_i32 : i32
    %11 = arith.addi %c0_i32, %10 : i32
    %c1_i32 = arith.constant 1 : i32
    %12:2 = scf.for %arg12 = %c0_i32 to %11 step %c1_i32 iter_args(%arg13 = %9, %arg14 = %9) -> (vector<4x32xf32>, vector<4x32xf32>)  : i32 {
      %c1_i32_18 = arith.constant 1 : i32
      %24 = arith.subi %8, %c1_i32_18 : i32
      %25 = arith.subi %24, %arg12 : i32
      %26 = arith.index_cast %arg12 : i32 to index
      %c0_19 = arith.constant 0 : index
      %c0_20 = arith.constant 0 : index
      %27 = vector.load %arg1[%26, %c0_19, %c0_20] : memref<8x4x96xf32, #tpu.memory_space<vmem>>, vector<1x4x96xf32>
      %28 = vector.shape_cast %27 : vector<1x4x96xf32> to vector<4x96xf32>
      %29 = arith.truncf %arg13 : vector<4x32xf32> to vector<4x32xbf16>
      %cst_21 = arith.constant dense<0.000000e+00> : vector<4x96xf32>
      %30 = tpu.matmul %29, %0, %cst_21 {dimension_numbers = #tpu.dot_dimension_numbers<[1], [0], [0], [1], [0, 0, 1, 1], [], []>} : vector<4x32xbf16>, vector<32x96xbf16>, vector<4x96xf32> -> vector<4x96xf32>
      %31 = vector.extract_strided_slice %28 {offsets = [0, 0], sizes = [4, 32], strides = [1, 1]} : vector<4x96xf32> to vector<4x32xf32>
      %32 = vector.extract_strided_slice %30 {offsets = [0, 0], sizes = [4, 32], strides = [1, 1]} : vector<4x96xf32> to vector<4x32xf32>
      %33 = arith.addf %31, %32 : vector<4x32xf32>
      %34 = arith.negf %33 : vector<4x32xf32>
      %35 = math.exp %34 : vector<4x32xf32>
      %cst_22 = arith.constant 1.000000e+00 : f32
      %36 = vector.broadcast %cst_22 : f32 to vector<4x32xf32>
      %37 = arith.addf %36, %35 : vector<4x32xf32>
      %38 = arith.divf %36, %37 : vector<4x32xf32>
      %39 = vector.extract_strided_slice %28 {offsets = [0, 32], sizes = [4, 32], strides = [1, 1]} : vector<4x96xf32> to vector<4x32xf32>
      %40 = vector.extract_strided_slice %30 {offsets = [0, 32], sizes = [4, 32], strides = [1, 1]} : vector<4x96xf32> to vector<4x32xf32>
      %41 = arith.addf %39, %40 : vector<4x32xf32>
      %42 = arith.negf %41 : vector<4x32xf32>
      %43 = math.exp %42 : vector<4x32xf32>
      %cst_23 = arith.constant 1.000000e+00 : f32
      %44 = vector.broadcast %cst_23 : f32 to vector<4x32xf32>
      %45 = arith.addf %44, %43 : vector<4x32xf32>
      %46 = arith.divf %44, %45 : vector<4x32xf32>
      %47 = vector.extract_strided_slice %28 {offsets = [0, 64], sizes = [4, 32], strides = [1, 1]} : vector<4x96xf32> to vector<4x32xf32>
      %48 = vector.extract_strided_slice %30 {offsets = [0, 64], sizes = [4, 32], strides = [1, 1]} : vector<4x96xf32> to vector<4x32xf32>
      %49 = arith.addf %48, %4 : vector<4x32xf32>
      %50 = arith.mulf %38, %49 : vector<4x32xf32>
      %51 = arith.addf %47, %50 : vector<4x32xf32>
      %52 = math.tanh %51 : vector<4x32xf32>
      %cst_24 = arith.constant 1.000000e+00 : f32
      %53 = vector.broadcast %cst_24 : f32 to vector<4x32xf32>
      %54 = arith.subf %53, %46 : vector<4x32xf32>
      %55 = arith.mulf %54, %52 : vector<4x32xf32>
      %56 = arith.mulf %46, %arg13 : vector<4x32xf32>
      %57 = arith.addf %55, %56 : vector<4x32xf32>
      %58 = arith.index_cast %25 : i32 to index
      %c0_25 = arith.constant 0 : index
      %c0_26 = arith.constant 0 : index
      %59 = vector.load %arg2[%58, %c0_25, %c0_26] : memref<8x4x96xf32, #tpu.memory_space<vmem>>, vector<1x4x96xf32>
      %60 = vector.shape_cast %59 : vector<1x4x96xf32> to vector<4x96xf32>
      %61 = arith.truncf %arg14 : vector<4x32xf32> to vector<4x32xbf16>
      %cst_27 = arith.constant dense<0.000000e+00> : vector<4x96xf32>
      %62 = tpu.matmul %61, %1, %cst_27 {dimension_numbers = #tpu.dot_dimension_numbers<[1], [0], [0], [1], [0, 0, 1, 1], [], []>} : vector<4x32xbf16>, vector<32x96xbf16>, vector<4x96xf32> -> vector<4x96xf32>
      %63 = vector.extract_strided_slice %60 {offsets = [0, 0], sizes = [4, 32], strides = [1, 1]} : vector<4x96xf32> to vector<4x32xf32>
      %64 = vector.extract_strided_slice %62 {offsets = [0, 0], sizes = [4, 32], strides = [1, 1]} : vector<4x96xf32> to vector<4x32xf32>
      %65 = arith.addf %63, %64 : vector<4x32xf32>
      %66 = arith.negf %65 : vector<4x32xf32>
      %67 = math.exp %66 : vector<4x32xf32>
      %cst_28 = arith.constant 1.000000e+00 : f32
      %68 = vector.broadcast %cst_28 : f32 to vector<4x32xf32>
      %69 = arith.addf %68, %67 : vector<4x32xf32>
      %70 = arith.divf %68, %69 : vector<4x32xf32>
      %71 = vector.extract_strided_slice %60 {offsets = [0, 32], sizes = [4, 32], strides = [1, 1]} : vector<4x96xf32> to vector<4x32xf32>
      %72 = vector.extract_strided_slice %62 {offsets = [0, 32], sizes = [4, 32], strides = [1, 1]} : vector<4x96xf32> to vector<4x32xf32>
      %73 = arith.addf %71, %72 : vector<4x32xf32>
      %74 = arith.negf %73 : vector<4x32xf32>
      %75 = math.exp %74 : vector<4x32xf32>
      %cst_29 = arith.constant 1.000000e+00 : f32
      %76 = vector.broadcast %cst_29 : f32 to vector<4x32xf32>
      %77 = arith.addf %76, %75 : vector<4x32xf32>
      %78 = arith.divf %76, %77 : vector<4x32xf32>
      %79 = vector.extract_strided_slice %60 {offsets = [0, 64], sizes = [4, 32], strides = [1, 1]} : vector<4x96xf32> to vector<4x32xf32>
      %80 = vector.extract_strided_slice %62 {offsets = [0, 64], sizes = [4, 32], strides = [1, 1]} : vector<4x96xf32> to vector<4x32xf32>
      %81 = arith.addf %80, %7 : vector<4x32xf32>
      %82 = arith.mulf %70, %81 : vector<4x32xf32>
      %83 = arith.addf %79, %82 : vector<4x32xf32>
      %84 = math.tanh %83 : vector<4x32xf32>
      %cst_30 = arith.constant 1.000000e+00 : f32
      %85 = vector.broadcast %cst_30 : f32 to vector<4x32xf32>
      %86 = arith.subf %85, %78 : vector<4x32xf32>
      %87 = arith.mulf %86, %84 : vector<4x32xf32>
      %88 = arith.mulf %78, %arg14 : vector<4x32xf32>
      %89 = arith.addf %87, %88 : vector<4x32xf32>
      %90 = arith.index_cast %arg12 : i32 to index
      %c0_31 = arith.constant 0 : index
      %c0_32 = arith.constant 0 : index
      %91 = vector.load %arg3[%90, %c0_31, %c0_32] : memref<8x4x32xf32, #tpu.memory_space<vmem>>, vector<1x4x32xf32>
      %92 = vector.shape_cast %91 : vector<1x4x32xf32> to vector<4x32xf32>
      %cst_33 = arith.constant 5.000000e-01 : f32
      %93 = vector.broadcast %cst_33 : f32 to vector<4x32xf32>
      %94 = arith.cmpf ogt, %92, %93 : vector<4x32xf32>
      %95 = arith.select %94, %57, %arg13 : vector<4x32xi1>, vector<4x32xf32>
      %96 = arith.index_cast %25 : i32 to index
      %c0_34 = arith.constant 0 : index
      %c0_35 = arith.constant 0 : index
      %97 = vector.load %arg3[%96, %c0_34, %c0_35] : memref<8x4x32xf32, #tpu.memory_space<vmem>>, vector<1x4x32xf32>
      %98 = vector.shape_cast %97 : vector<1x4x32xf32> to vector<4x32xf32>
      %cst_36 = arith.constant 5.000000e-01 : f32
      %99 = vector.broadcast %cst_36 : f32 to vector<4x32xf32>
      %100 = arith.cmpf ogt, %98, %99 : vector<4x32xf32>
      %101 = arith.select %100, %89, %arg14 : vector<4x32xi1>, vector<4x32xf32>
      scf.yield %95, %101 : vector<4x32xf32>, vector<4x32xf32>
    }
    %13 = arith.truncf %12#1 : vector<4x32xf32> to vector<4x32xbf16>
    %c0_8 = arith.constant 0 : index
    %c0_9 = arith.constant 0 : index
    %14 = vector.load %arg8[%c0_8, %c0_9] : memref<32x8xbf16, #tpu.memory_space<vmem>>, vector<32x8xbf16>
    %cst_10 = arith.constant dense<0.000000e+00> : vector<4x8xf32>
    %15 = tpu.matmul %13, %14, %cst_10 {dimension_numbers = #tpu.dot_dimension_numbers<[1], [0], [0], [1], [0, 0, 1, 1], [], []>} : vector<4x32xbf16>, vector<32x8xbf16>, vector<4x8xf32> -> vector<4x8xf32>
    %16 = arith.truncf %12#0 : vector<4x32xf32> to vector<4x32xbf16>
    %c0_11 = arith.constant 0 : index
    %c0_12 = arith.constant 0 : index
    %17 = vector.load %arg9[%c0_11, %c0_12] : memref<32x8xbf16, #tpu.memory_space<vmem>>, vector<32x8xbf16>
    %cst_13 = arith.constant dense<0.000000e+00> : vector<4x8xf32>
    %18 = tpu.matmul %16, %17, %cst_13 {dimension_numbers = #tpu.dot_dimension_numbers<[1], [0], [0], [1], [0, 0, 1, 1], [], []>} : vector<4x32xbf16>, vector<32x8xbf16>, vector<4x8xf32> -> vector<4x8xf32>
    %19 = arith.addf %15, %18 : vector<4x8xf32>
    %c0_14 = arith.constant 0 : index
    %c0_15 = arith.constant 0 : index
    %20 = vector.load %arg10[%c0_14, %c0_15] : memref<1x8xf32, #tpu.memory_space<vmem>>, vector<1x8xf32>
    %21 = vector.broadcast %20 : vector<1x8xf32> to vector<4x8xf32>
    %22 = arith.addf %19, %21 : vector<4x8xf32>
    %c0_16 = arith.constant 0 : index
    %c0_17 = arith.constant 0 : index
    %23 = vector.load %arg11[%c0_16, %c0_17] : memref<4x8xf32, #tpu.memory_space<vmem>>, vector<4x8xf32>
    tpu.vector_store %arg11[%c0_16, %c0_17], %22 {strides = array<i32>} : memref<4x8xf32, #tpu.memory_space<vmem>>, vector<4x8xf32>,
    return
  }
}

</mosaic_0001>

<llo_original>
// kernel: rnn_classifier_forward.1
$region0: #{rnn_classifier_forward.1}
  #allocation0 [shape = 'u32[]', space=smem, size = 0x4, offset = 0x4, fixed_abs, tag = 'smem constant byte address 0x4 - core index']
  #allocation1 [shape = 'u32[144,128]{1,0:T(1,128)}', space=vmem, size = 0x12000, scoped, tag = 'internal scratch']
  #allocation2 [shape = 's32[1]{0:T(128)S(6)}', space=smem, size = 0x200, scoped, tag = 'scoped memory for rnn_classifier_forward.1']
  %s0 = inlined_call_operand.<no memory space> [shape: s32[1], index: 0, kind: input, shape index: {}]
  %s1 = inlined_call_operand.vmem [shape: f32[8,4,96], index: 1, kind: input, shape index: {}]
  %s2 = inlined_call_operand.vmem [shape: f32[8,4,96], index: 2, kind: input, shape index: {}]
  %s3 = inlined_call_operand.vmem [shape: f32[8,4,32], index: 3, kind: input, shape index: {}]
  %s4 = inlined_call_operand.vmem [shape: bf16[32,96], index: 4, kind: input, shape index: {}]
  %s5 = inlined_call_operand.vmem [shape: bf16[32,96], index: 5, kind: input, shape index: {}]
  %s6 = inlined_call_operand.vmem [shape: f32[1,32], index: 6, kind: input, shape index: {}]
  %s7 = inlined_call_operand.vmem [shape: f32[1,32], index: 7, kind: input, shape index: {}]
  %s8 = inlined_call_operand.vmem [shape: bf16[32,8], index: 8, kind: input, shape index: {}]
  %s9 = inlined_call_operand.vmem [shape: bf16[32,8], index: 9, kind: input, shape index: {}]
  %s10 = inlined_call_operand.vmem [shape: f32[1,8], index: 10, kind: input, shape index: {}]
  %s11 = inlined_call_operand.hbm [shape: f32[4,8], index: 11, kind: output, shape index: {}]
  %s12 = sld [smem:[#allocation0]]
  $region61: #{rnn_classifier_forward.1} parent=0
    _
  %s14 = ssub.s32 1, %s12
  %s15 = scalar_select 0, %s14, %s12
  %16 = sst [smem:[#allocation2]] %s0
  $region1: #{rnn_classifier_forward.1} parent=0
    #allocation3 [shape = 'u8[2048]{0}', space=vmem, size = 0x800, scoped, tag = 'output window, operand 0, single buffered']
    #allocation4 [shape = 's32[1]{0}', space=sflag, size = 0x4, scoped, tag = 'scoped memory for rnn_classifier_forward.1']
    %17 = vsyncpa [#allocation4], 0
    // Predicated region
    $region2: #{rnn_classifier_forward.1} parent=1 // pred_check
      _
    $region3: #{rnn_classifier_forward.1} parent=1 // pred_check_branch
      %19 = sbr.rel (0) target = $region5
    $region4: #{rnn_classifier_forward.1} parent=1 // pred_region
      _
    $region5: #{rnn_classifier_forward.1} parent=1 // pred_fallthru
      _
    // Predicated region
    $region6: #{rnn_classifier_forward.1} parent=1 // pred_check
      _
    $region7: #{rnn_classifier_forward.1} parent=1 // pred_check_branch
      %21 = sbr.rel (0) target = $region9
    $region8: #{rnn_classifier_forward.1} parent=1 // pred_region
      _
    $region9: #{rnn_classifier_forward.1} parent=1 // pred_fallthru
      _
    // Predicated region
    $region10: #{rnn_classifier_forward.1} parent=1 // pred_check
      _
    $region11: #{rnn_classifier_forward.1} parent=1 // pred_check_branch
      %23 = sbr.rel (0) target = $region13
    $region12: #{rnn_classifier_forward.1} parent=1 // pred_region
      _
    $region13: #{rnn_classifier_forward.1} parent=1 // pred_fallthru
      _
    // Predicated region
    $region14: #{rnn_classifier_forward.1} parent=1 // pred_check
      _
    $region15: #{rnn_classifier_forward.1} parent=1 // pred_check_branch
      %25 = sbr.rel (0) target = $region17
    $region16: #{rnn_classifier_forward.1} parent=1 // pred_region
      _
    $region17: #{rnn_classifier_forward.1} parent=1 // pred_fallthru
      _
    // Predicated region
    $region18: #{rnn_classifier_forward.1} parent=1 // pred_check
      _
    $region19: #{rnn_classifier_forward.1} parent=1 // pred_check_branch
      %27 = sbr.rel (0) target = $region21
    $region20: #{rnn_classifier_forward.1} parent=1 // pred_region
      _
    $region21: #{rnn_classifier_forward.1} parent=1 // pred_fallthru
      _
    // Predicated region
    $region22: #{rnn_classifier_forward.1} parent=1 // pred_check
      _
    $region23: #{rnn_classifier_forward.1} parent=1 // pred_check_branch
      %29 = sbr.rel (0) target = $region25
    $region24: #{rnn_classifier_forward.1} parent=1 // pred_region
      _
    $region25: #{rnn_classifier_forward.1} parent=1 // pred_fallthru
      _
    // Predicated region
    $region26: #{rnn_classifier_forward.1} parent=1 // pred_check
      _
    $region27: #{rnn_classifier_forward.1} parent=1 // pred_check_branch
      %31 = sbr.rel (0) target = $region29
    $region28: #{rnn_classifier_forward.1} parent=1 // pred_region
      _
    $region29: #{rnn_classifier_forward.1} parent=1 // pred_fallthru
      _
    // Predicated region
    $region30: #{rnn_classifier_forward.1} parent=1 // pred_check
      _
    $region31: #{rnn_classifier_forward.1} parent=1 // pred_check_branch
      %33 = sbr.rel (0) target = $region33
    $region32: #{rnn_classifier_forward.1} parent=1 // pred_region
      _
    $region33: #{rnn_classifier_forward.1} parent=1 // pred_fallthru
      _
    // Predicated region
    $region34: #{rnn_classifier_forward.1} parent=1 // pred_check
      _
    $region35: #{rnn_classifier_forward.1} parent=1 // pred_check_branch
      %35 = sbr.rel (0) target = $region37
    $region36: #{rnn_classifier_forward.1} parent=1 // pred_region
      _
    $region37: #{rnn_classifier_forward.1} parent=1 // pred_fallthru
      _
    // Predicated region
    $region38: #{rnn_classifier_forward.1} parent=1 // pred_check
      _
    $region39: #{rnn_classifier_forward.1} parent=1 // pred_check_branch
      %37 = sbr.rel (0) target = $region41
    $region40: #{rnn_classifier_forward.1} parent=1 // pred_region
      _
    $region41: #{rnn_classifier_forward.1} parent=1 // pred_fallthru
      _
    // Predicated region
    $region42: #{rnn_classifier_forward.1} parent=1 // pred_check
      _
    $region43: #{rnn_classifier_forward.1} parent=1 // pred_check_branch
      %39 = sbr.rel (0) target = $region45
    $region44: #{rnn_classifier_forward.1} parent=1 // pred_region
      _
    $region45: #{rnn_classifier_forward.1} parent=1 // pred_fallthru
      _
    %v41 = vld [vmem:[%s4] sm:$0xf]
    %v42 = vld [vmem:[%s4 + $0x4] sm:$0xf]
    %v43 = vld [vmem:[%s4 + $0x8] sm:$0xf]
    %v44 = vld [vmem:[%s4 + $0xc] sm:$0xf]
    %v45 = vld [vmem:[%s5] sm:$0xf]
    %v46 = vld [vmem:[%s5 + $0x4] sm:$0xf]
    %v47 = vld [vmem:[%s5 + $0x8] sm:$0xf]
    %v48 = vld [vmem:[%s5 + $0xc] sm:$0xf]
    %v49 = vld [vmem:[%s6] sm:$0x1]
    %v51 = vlaneseq
    %v52 = vshrl.u32 %v51, 7
    %v53 = vsub.s32 0, %v52
    %v54 = vrot.slane %v49, %v53
    %v55 = vld [vmem:[%s7] sm:$0x1]
    %v57 = vlaneseq
    %v58 = vshrl.u32 %v57, 7
    %v59 = vsub.s32 0, %v58
    %v60 = vrot.slane %v55, %v59
    %s61 = sld [smem:[#allocation2]]
    // While loop
    $region46: #{rnn_classifier_forward.1} parent=1 // loop_pre_header
      _
    $region47: #{rnn_classifier_forward.1} parent=1 // loop_header
      %s63 = sphi 0, %s65
      %p64 = scmp.ge.s32.totalorder %s63, %s61
      %v68 = vphi 0.0, %v266
      %v69 = vphi 0.0, %v274
    $region48: #{rnn_classifier_forward.1} parent=1 // loop_header_branch
      %67 = sbr.rel (%p64) target = $region52
    $region49: #{rnn_classifier_forward.1} parent=1 // loop_body
      %s70 = ssub.s32 %s61, 1
      %s71 = ssub.s32 %s70, %s63
      %s72 = smul.u32 %s63, 4
      %s73 = scalar_lea.vmem %s1, %s72
      %v74 = vld [vmem:[%s73] sm:$0xf]
      %v75 = vpack.c.bf16 %v68, %v68
      %v80 = vunpack.c.l.b16 %v41
      %v81 = vunpack.c.l.b16 %v42
      %v82 = vunpack.c.l.b16 %v43
      %v83 = vunpack.c.l.b16 %v44
      %v84 = vpack.c.b16 %v81, %v80
      %v85 = vpack.c.b16 %v83, %v82
      %vm88 = vcmask 261120
      %v90 = vsel %vm88, %v75, 0
      %92 = vmatprep.subr.bf16.mxu0 0
      %93 = vmatpush1.bf16.msra.mxu0 0
      %94 = vmatprep.subr.bf16.mxu0 0
      %95 = vmatpush1.bf16.msra.mxu0 0
      %96 = vmatprep.subr.bf16.mxu0 0
      %97 = vmatpush1.bf16.msra.mxu0 0
      %98 = vmatprep.subr.bf16.mxu0 0
      %99 = vmatpush1.bf16.msra.mxu0 0
      %100 = vmatprep.subr.bf16.mxu0 0
      %101 = vmatpush1.bf16.msra.mxu0 0
      %102 = vmatprep.subr.bf16.mxu0 0
      %103 = vmatpush1.bf16.msra.mxu0 0
      %104 = vmatprep.subr.bf16.mxu0 0
      %105 = vmatpush1.bf16.msra.mxu0 %v85
      %106 = vmatprep.subr.bf16.mxu0 0
      %107 = vmatpush1.bf16.msra.mxu0 %v84
      %108 = vmatprep.subr.bf16.mxu0 0
      %109 = vmatpush2.bf16.msra.mxu0 0
      %110 = vmatprep.subr.bf16.mxu0 0
      %111 = vmatpush2.bf16.msra.mxu0 0
      %112 = vmatprep.subr.bf16.mxu0 0
      %113 = vmatpush2.bf16.msra.mxu0 0
      %114 = vmatprep.subr.bf16.mxu0 0
      %115 = vmatpush2.bf16.msra.mxu0 0
      %116 = vmatprep.subr.bf16.mxu0 0
      %117 = vmatpush2.bf16.msra.mxu0 0
      %118 = vmatprep.subr.bf16.mxu0 0
      %119 = vmatpush2.bf16.msra.mxu0 0
      %120 = vmatprep.subr.bf16.mxu0 0
      %121 = vmatpush2.bf16.msra.mxu0 0
      %122 = vmatprep.subr.bf16.mxu0 0
      %123 = vmatpush2.bf16.msra.mxu0 0
      %124 = vmatprep.mubr.bf16.mxu0 0
      %125 = vmatmul.mubr.bf16.gmra.mxu0 %v90
      %v126 = vpop.f32.mrf.mxu0
      %v127 = vadd.f32 0.0, %v126
      %v128 = vpop.f32.mrf.mxu0
      %v129 = vpop.f32.mrf.mxu0
      %v130 = vpop.f32.mrf.mxu0
      %131 = vdwg.mxu0
      %v132 = vadd.f32 %v74, %v127
      %v133 = vxor.u32 %v132, 2147483648
      %v134 = vmul.f32 %v133, 1.442695
      %v135 = vpow.pop %v134
      %v136 = vadd.f32 %v135, 1.0
      %v137 = vrcp.pop %v136
      %v138 = vmul.f32 1.0, %v137
      %139 = vrot.lane.b32.xlu0 %v54, 64
      %v140 = vpop.permute.xlu0 %139
      %v142 = vadd.f32 %v127, %v140
      %144 = vrot.lane.b32.xlu0 %v142, 64
      %v145 = vpop.permute.xlu0 %144
      %v147 = vmul.f32 %v138, %v145
      %149 = vrot.lane.b32.xlu0 %v147, 64
      %v150 = vpop.permute.xlu0 %149
      %v152 = vadd.f32 %v74, %v150
      %v153 = vtanh.pop %v152
      %v154 = vsub.f32 1.0, %v138
      %156 = vrot.lane.b32.xlu0 %v153, 96
      %v157 = vpop.permute.xlu0 %156
      %v159 = vmul.f32 %v154, %v157
      %161 = vrot.lane.b32.xlu0 %v68, 32
      %v162 = vpop.permute.xlu0 %161
      %v164 = vmul.f32 %v138, %v162
      %v165 = vadd.f32 %v159, %v164
      %s166 = smul.u32 %s71, 4
      %s167 = scalar_lea.vmem %s2, %s166
      %v168 = vld [vmem:[%s167] sm:$0xf]
      %v169 = vpack.c.bf16 %v69, %v69
      %v174 = vunpack.c.l.b16 %v45
      %v175 = vunpack.c.l.b16 %v46
      %v176 = vunpack.c.l.b16 %v47
      %v177 = vunpack.c.l.b16 %v48
      %v178 = vpack.c.b16 %v175, %v174
      %v179 = vpack.c.b16 %v177, %v176
      %v183 = vsel %vm88, %v169, 0
      %185 = vmatprep.subr.bf16.mxu0 0
      %186 = vmatpush1.bf16.msra.mxu0 0
      %187 = vmatprep.subr.bf16.mxu0 0
      %188 = vmatpush1.bf16.msra.mxu0 0
      %189 = vmatprep.subr.bf16.mxu0 0
      %190 = vmatpush1.bf16.msra.mxu0 0
      %191 = vmatprep.subr.bf16.mxu0 0
      %192 = vmatpush1.bf16.msra.mxu0 0
      %193 = vmatprep.subr.bf16.mxu0 0
      %194 = vmatpush1.bf16.msra.mxu0 0
      %195 = vmatprep.subr.bf16.mxu0 0
      %196 = vmatpush1.bf16.msra.mxu0 0
      %197 = vmatprep.subr.bf16.mxu0 0
      %198 = vmatpush1.bf16.msra.mxu0 %v179
      %199 = vmatprep.subr.bf16.mxu0 0
      %200 = vmatpush1.bf16.msra.mxu0 %v178
      %201 = vmatprep.subr.bf16.mxu0 0
      %202 = vmatpush2.bf16.msra.mxu0 0
      %203 = vmatprep.subr.bf16.mxu0 0
      %204 = vmatpush2.bf16.msra.mxu0 0
      %205 = vmatprep.subr.bf16.mxu0 0
      %206 = vmatpush2.bf16.msra.mxu0 0
      %207 = vmatprep.subr.bf16.mxu0 0
      %208 = vmatpush2.bf16.msra.mxu0 0
      %209 = vmatprep.subr.bf16.mxu0 0
      %210 = vmatpush2.bf16.msra.mxu0 0
      %211 = vmatprep.subr.bf16.mxu0 0
      %212 = vmatpush2.bf16.msra.mxu0 0
      %213 = vmatprep.subr.bf16.mxu0 0
      %214 = vmatpush2.bf16.msra.mxu0 0
      %215 = vmatprep.subr.bf16.mxu0 0
      %216 = vmatpush2.bf16.msra.mxu0 0
      %217 = vmatprep.mubr.bf16.mxu0 0
      %218 = vmatmul.mubr.bf16.gmra.mxu0 %v183
      %v219 = vpop.f32.mrf.mxu0
      %v220 = vadd.f32 0.0, %v219
      %v221 = vpop.f32.mrf.mxu0
      %v222 = vpop.f32.mrf.mxu0
      %v223 = vpop.f32.mrf.mxu0
      %224 = vdwg.mxu0
      %v225 = vadd.f32 %v168, %v220
      %v226 = vxor.u32 %v225, 2147483648
      %v227 = vmul.f32 %v226, 1.442695
      %v228 = vpow.pop %v227
      %v229 = vadd.f32 %v228, 1.0
      %v230 = vrcp.pop %v229
      %v231 = vmul.f32 1.0, %v230
      %232 = vrot.lane.b32.xlu0 %v60, 64
      %v233 = vpop.permute.xlu0 %232
      %v235 = vadd.f32 %v220, %v233
      %237 = vrot.lane.b32.xlu0 %v235, 64
      %v238 = vpop.permute.xlu0 %237
      %v240 = vmul.f32 %v231, %v238
      %242 = vrot.lane.b32.xlu0 %v240, 64
      %v243 = vpop.permute.xlu0 %242
      %v245 = vadd.f32 %v168, %v243
      %v246 = vtanh.pop %v245
      %v247 = vsub.f32 1.0, %v231
      %249 = vrot.lane.b32.xlu0 %v246, 96
      %v250 = vpop.permute.xlu0 %249
      %v252 = vmul.f32 %v247, %v250
      %254 = vrot.lane.b32.xlu0 %v69, 32
      %v255 = vpop.permute.xlu0 %254
      %v257 = vmul.f32 %v231, %v255
      %v258 = vadd.f32 %v252, %v257
      %s259 = scalar_lea.vmem %s3, %s72
      %v260 = vld [vmem:[%s259] sm:$0xf]
      %vm261 = vcmp.gt.f32.partialorder %v260, 0.5
      %263 = vrot.lane.b32.xlu0 %v165, 96
      %v264 = vpop.permute.xlu0 %263
      %v266 = vsel %vm261, %v264, %v68
      %s267 = scalar_lea.vmem %s3, %s166
      %v268 = vld [vmem:[%s267] sm:$0xf]
      %vm269 = vcmp.gt.f32.partialorder %v268, 0.5
      %271 = vrot.lane.b32.xlu0 %v258, 96
      %v272 = vpop.permute.xlu0 %271
      %v274 = vsel %vm269, %v272, %v69
    $region50: #{rnn_classifier_forward.1} parent=1 // loop_footer
      %s65 = sadd.s32 %s63, 1
    $region51: #{rnn_classifier_forward.1} parent=1 // loop_footer_branch
      %62 = sbr.rel target = $region47
    $region52: #{rnn_classifier_forward.1} parent=1 // loop_exit
      _
    %v275 = vpack.c.bf16 %v69, %v69
    %v276 = vld [vmem:[%s8] sm:$0xf]
    %v277 = vld [vmem:[%s8 + $0x4] sm:$0xf]
    %v278 = vld [vmem:[%s8 + $0x8] sm:$0xf]
    %v279 = vld [vmem:[%s8 + $0xc] sm:$0xf]
    %v280 = vpack.c.bf16 %v68, %v68
    %v281 = vld [vmem:[%s9] sm:$0xf]
    %v282 = vld [vmem:[%s9 + $0x4] sm:$0xf]
    %v283 = vld [vmem:[%s9 + $0x8] sm:$0xf]
    %v284 = vld [vmem:[%s9 + $0xc] sm:$0xf]
    %v289 = vunpack.c.l.b16 %v281
    %v290 = vunpack.c.l.b16 %v282
    %v291 = vunpack.c.l.b16 %v283
    %v292 = vunpack.c.l.b16 %v284
    %v293 = vpack.c.b16 %v290, %v289
    %v294 = vpack.c.b16 %v292, %v291
    %vm297 = vcmask 261120
    %v299 = vsel %vm297, %v280, 0
    %301 = vmatprep.subr.bf16.mxu0 0
    %302 = vmatpush1.bf16.msra.mxu0 0
    %303 = vmatprep.subr.bf16.mxu0 0
    %304 = vmatpush1.bf16.msra.mxu0 0
    %305 = vmatprep.subr.bf16.mxu0 0
    %306 = vmatpush1.bf16.msra.mxu0 0
    %307 = vmatprep.subr.bf16.mxu0 0
    %308 = vmatpush1.bf16.msra.mxu0 0
    %309 = vmatprep.subr.bf16.mxu0 0
    %310 = vmatpush1.bf16.msra.mxu0 0
    %311 = vmatprep.subr.bf16.mxu0 0
    %312 = vmatpush1.bf16.msra.mxu0 0
    %313 = vmatprep.subr.bf16.mxu0 0
    %314 = vmatpush1.bf16.msra.mxu0 %v294
    %315 = vmatprep.subr.bf16.mxu0 0
    %316 = vmatpush1.bf16.msra.mxu0 %v293
    %317 = vmatprep.subr.bf16.mxu0 0
    %318 = vmatpush2.bf16.msra.mxu0 0
    %319 = vmatprep.subr.bf16.mxu0 0
    %320 = vmatpush2.bf16.msra.mxu0 0
    %321 = vmatprep.subr.bf16.mxu0 0
    %322 = vmatpush2.bf16.msra.mxu0 0
    %323 = vmatprep.subr.bf16.mxu0 0
    %324 = vmatpush2.bf16.msra.mxu0 0
    %325 = vmatprep.subr.bf16.mxu0 0
    %326 = vmatpush2.bf16.msra.mxu0 0
    %327 = vmatprep.subr.bf16.mxu0 0
    %328 = vmatpush2.bf16.msra.mxu0 0
    %329 = vmatprep.subr.bf16.mxu0 0
    %330 = vmatpush2.bf16.msra.mxu0 0
    %331 = vmatprep.subr.bf16.mxu0 0
    %332 = vmatpush2.bf16.msra.mxu0 0
    %333 = vmatprep.mubr.bf16.mxu0 0
    %334 = vmatmul.mubr.bf16.gmra.mxu0 %v299
    %v335 = vpop.f32.mrf.mxu0
    %v336 = vadd.f32 0.0, %v335
    %v337 = vpop.f32.mrf.mxu0
    %v338 = vpop.f32.mrf.mxu0
    %v339 = vpop.f32.mrf.mxu0
    %340 = vdwg.mxu0
    %v345 = vunpack.c.l.b16 %v276
    %v346 = vunpack.c.l.b16 %v277
    %v347 = vunpack.c.l.b16 %v278
    %v348 = vunpack.c.l.b16 %v279
    %v349 = vpack.c.b16 %v346, %v345
    %v350 = vpack.c.b16 %v348, %v347
    %v354 = vsel %vm297, %v275, 0
    %356 = vmatprep.subr.bf16.mxu0 0
    %357 = vmatpush1.bf16.msra.mxu0 0
    %358 = vmatprep.subr.bf16.mxu0 0
    %359 = vmatpush1.bf16.msra.mxu0 0
    %360 = vmatprep.subr.bf16.mxu0 0
    %361 = vmatpush1.bf16.msra.mxu0 0
    %362 = vmatprep.subr.bf16.mxu0 0
    %363 = vmatpush1.bf16.msra.mxu0 0
    %364 = vmatprep.subr.bf16.mxu0 0
    %365 = vmatpush1.bf16.msra.mxu0 0
    %366 = vmatprep.subr.bf16.mxu0 0
    %367 = vmatpush1.bf16.msra.mxu0 0
    %368 = vmatprep.subr.bf16.mxu0 0
    %369 = vmatpush1.bf16.msra.mxu0 %v350
    %370 = vmatprep.subr.bf16.mxu0 0
    %371 = vmatpush1.bf16.msra.mxu0 %v349
    %372 = vmatprep.subr.bf16.mxu0 0
    %373 = vmatpush2.bf16.msra.mxu0 0
    %374 = vmatprep.subr.bf16.mxu0 0
    %375 = vmatpush2.bf16.msra.mxu0 0
    %376 = vmatprep.subr.bf16.mxu0 0
    %377 = vmatpush2.bf16.msra.mxu0 0
    %378 = vmatprep.subr.bf16.mxu0 0
    %379 = vmatpush2.bf16.msra.mxu0 0
    %380 = vmatprep.subr.bf16.mxu0 0
    %381 = vmatpush2.bf16.msra.mxu0 0
    %382 = vmatprep.subr.bf16.mxu0 0
    %383 = vmatpush2.bf16.msra.mxu0 0
    %384 = vmatprep.subr.bf16.mxu0 0
    %385 = vmatpush2.bf16.msra.mxu0 0
    %386 = vmatprep.subr.bf16.mxu0 0
    %387 = vmatpush2.bf16.msra.mxu0 0
    %388 = vmatprep.mubr.bf16.mxu0 0
    %389 = vmatmul.mubr.bf16.gmra.mxu0 %v354
    %v390 = vpop.f32.mrf.mxu0
    %v391 = vadd.f32 %v336, %v390
    %v392 = vpop.f32.mrf.mxu0
    %v393 = vpop.f32.mrf.mxu0
    %v394 = vpop.f32.mrf.mxu0
    %395 = vdwg.mxu0
    %v396 = vld [vmem:[%s10] sm:$0x1]
    %v398 = vlaneseq
    %v399 = vshrl.u32 %v398, 7
    %v400 = vsub.s32 0, %v399
    %v401 = vrot.slane %v396, %v400
    %v403 = vadd.f32 %v391, %v401
    %vm404 = vcmask 60416
    %405 = vst.msk [vmem:[#allocation3] sm:$0xf] %vm404, %v403
    // Predicated region
    $region53: #{rnn_classifier_forward.1} parent=1 // pred_check
      _
    $region54: #{rnn_classifier_forward.1} parent=1 // pred_check_branch
      %407 = sbr.rel (0) target = $region56
    $region55: #{rnn_classifier_forward.1} parent=1 // pred_region
      %s409 = ssub.s32 64, 64
      %410 = vsyncadd [#allocation4], %s409
      %s412 = sshll.u32 [#allocation3], 4
      %s413 = int_to_ptr.vmem [resolvable:$true] %s412
      %415 = dma.vmem_to_hbm [thread:$0]  %s413, 64, %s11, [#allocation4]
    $region56: #{rnn_classifier_forward.1} parent=1 // pred_fallthru
      _
    // Predicated region
    $region57: #{rnn_classifier_forward.1} parent=1 // pred_check
      _
    $region58: #{rnn_classifier_forward.1} parent=1 // pred_check_branch
      %417 = sbr.rel (0) target = $region60
    $region59: #{rnn_classifier_forward.1} parent=1 // pred_region
      %418 = dma.done [#allocation4], 64
    $region60: #{rnn_classifier_forward.1} parent=1 // pred_fallthru
      _
    %419 = vsyncpa [#allocation4], 1

</llo_original>
